<compile_context>
chip_gen: v6e
topology: v6e:2x2x1
jax: 0.10.0
libtpu: 0.0.40
codegen_flags: <defaults>
</compile_context>

<pallas_src>
import functools
import math

import jax
import jax.numpy as jnp
from jax import lax
from jax.experimental import pallas as pl
from jax.experimental.pallas import tpu as pltpu


def _atom_distances_kernel(*refs, n_nbh, has_cell, has_mask, return_dirs):
    it = iter(refs)
    pos_ref = next(it)                            # (1, 3, A)   VMEM f32 (resident)
    nbr_ref = next(it)                            # (1, 1, TM)  VMEM i32
    cell_ref = next(it) if has_cell else None     # (B*9,)      SMEM f32 (whole array)
    off_ref = next(it) if has_cell else None      # (1, 3, TM)  VMEM i8
    mask_ref = next(it) if has_mask else None     # (1, 1, TM)  VMEM i8
    dist_ref = next(it)                           # (1, 1, TM)  f32
    dvec_ref = next(it) if return_dirs else None  # (1, 3, TM)  f32

    pos = pos_ref[0]                              # (3, A)
    nbr = nbr_ref[0]                              # (1, TM)
    A = pos.shape[1]
    TM = nbr.shape[1]
    ta = TM // n_nbh                              # whole atoms covered by this tile

    # --- neighbor gather + center subtraction in ONE MXU matmul --------------
    #   dvec[:, m] = pos[:, nbr[m]] - pos[:, m // n_nbh]
    atom_ids = lax.broadcasted_iota(jnp.int32, (A, TM), 0)
    lane_ids = lax.broadcasted_iota(jnp.int32, (A, TM), 1)
    nbr_oh = (atom_ids == nbr).astype(jnp.float32)                  # (A, TM)
    # Center one-hot without an integer divide: the tile covers whole neighbor
    # rows, so lane j belongs to local atom j // n_nbh  <=>  a*n <= j < (a+1)*n.
    lo = (atom_ids - pl.program_id(1) * ta) * n_nbh
    ctr_oh = ((lo <= lane_ids) & (lane_ids < lo + n_nbh)).astype(jnp.float32)
    dvec = jnp.dot(pos, nbr_oh - ctr_oh,
                   precision=lax.Precision.HIGHEST,
                   preferred_element_type=jnp.float32)              # (3, TM)

    if has_cell:
        b = pl.program_id(0)
        off = off_ref[0].astype(jnp.float32)                        # (3, TM)
        ox, oy, oz = off[0:1, :], off[1:2, :], off[2:3, :]
        # offsets @ cell as 9 scalar*vector FMAs on the VPU;
        # cell[b, d, e] lives at SMEM index 9*b + 3*d + e.
        rows = [cell_ref[9 * b + e] * ox
                + cell_ref[9 * b + 3 + e] * oy
                + cell_ref[9 * b + 6 + e] * oz for e in range(3)]
        dvec = dvec + jnp.concatenate(rows, axis=0)                 # (3, TM)

    # --- norm / masking / normalization (rsqrt on the EUP, no divides) -------
    sumsq = jnp.sum(dvec * dvec, axis=0, keepdims=True)             # (1, TM)
    inv = lax.rsqrt(sumsq)                                          # inf where sumsq == 0
    dist = jnp.where(sumsq > 0.0, sumsq * inv, 0.0)                 # == sqrt(sumsq)

    if has_mask:
        valid = mask_ref[0] != 0                                    # (1, TM)
        dist_ref[0] = jnp.where(valid, dist, 0.0)
        if return_dirs:
            inv_den = jnp.where(valid, inv, 1.0)   # ref: denom = dist if valid else 1
            dvec_ref[0] = dvec * inv_den
    else:
        dist_ref[0] = dist
        if return_dirs:
            dvec_ref[0] = dvec * inv


def _choose_tile(A, N, M, B, has_cell, has_mask, return_dirs):
    """Tile width (lanes) over the flattened pair axis m = a*N + n.

    TM is a multiple of lcm(128, N): tiles cover whole neighbor rows (center
    one-hot needs no runtime divide) and all stores stay lane-dense.
    """
    lane = 128
    q = N // math.gcd(N, lane) * lane                 # lcm(N, 128)
    # HBM bytes streamed per pair.
    stream = 8 + (3 if has_cell else 0) + (1 if has_mask else 0) \
             + (12 if return_dirs else 0)
    cap = (1 << 20) // stream                         # ~1 MiB streamed per grid step
    cap = min(cap, (4 << 20) // (4 * max(A, 1)))      # (A, TM) f32 one-hot <= 4 MiB
    cap = min(cap, 32768)
    # TODO(synk): for huge, poorly 128-aligned N_nbh, lcm(128, N) can exceed the
    # VMEM-friendly cap; that case needs per-pair tiling with a runtime m//N or a
    # DMA row gather (also the right path when A reaches hundreds of atoms).
    tm = max(q, cap // q * q)
    mp = -(-M // q) * q
    tm = min(tm, mp)
    if B == 1 and mp >= 2 * q:                        # >=2 parallel steps for v7x's 2 TCs
        tm = min(tm, max(q, mp // (2 * q) * q))
    return tm


def atom_distances_pallas(positions, neighbors, cell=None, cell_offsets=None,
                          neighbor_mask=None, return_directions=False):
    """Pallas equivalent of AtomDistances(return_directions).forward(...)."""
    positions = jnp.asarray(positions, jnp.float32)
    neighbors = jnp.asarray(neighbors, jnp.int32)
    B, A, _ = positions.shape
    _, _, N = neighbors.shape
    M = A * N

    has_cell = cell is not None
    has_mask = neighbor_mask is not None

    TM = _choose_tile(A, N, M, B, has_cell, has_mask, return_directions)
    Mp = -(-M // TM) * TM
    n_tiles = Mp // TM

    def flat_pad(x):                 # (..., M) -> (..., Mp); n-minor, no transpose
        if Mp != M:
            x = jnp.pad(x, [(0, 0)] * (x.ndim - 1) + [(0, Mp - M)])
        return x

    # --- wrapper-side layout plumbing (pairs stay in natural n-minor order) --
    pos_t = jnp.transpose(positions, (0, 2, 1))                       # (B, 3, A), tiny
    nbr_f = flat_pad(neighbors.reshape(B, 1, M))                      # reshape only

    inputs = [pos_t, nbr_f]
    in_specs = [
        pl.BlockSpec((1, 3, A), lambda b, t: (b, 0, 0)),              # positions (resident)
        pl.BlockSpec((1, 1, TM), lambda b, t: (b, 0, t)),             # neighbor indices
    ]

    if has_cell:
        cell_flat = jnp.asarray(cell, jnp.float32).reshape(B * 9)     # 1-D SMEM scalars
        # Cell offsets are small integer image counts -> stream as int8 (3 B/pair).
        # TODO(synk): widen to int32 if |offset| can exceed 127 in your data.
        off_i8 = jnp.asarray(cell_offsets).astype(jnp.int8)           # (B, A, N, 3)
        off_f = flat_pad(jnp.transpose(off_i8, (0, 3, 1, 2)).reshape(B, 3, M))
        inputs += [cell_flat, off_f]
        in_specs += [
            pl.BlockSpec(memory_space=pltpu.MemorySpace.SMEM),        # cell as SMEM scalars
            pl.BlockSpec((1, 3, TM), lambda b, t: (b, 0, t)),         # cell offsets (i8)
        ]

    if has_mask:
        mask_i8 = (jnp.asarray(neighbor_mask) != 0).astype(jnp.int8)
        mask_f = flat_pad(mask_i8.reshape(B, 1, M))                   # reshape + cast only
        inputs.append(mask_f)
        in_specs.append(pl.BlockSpec((1, 1, TM), lambda b, t: (b, 0, t)))

    out_shape = [jax.ShapeDtypeStruct((B, 1, Mp), jnp.float32)]
    out_specs = [pl.BlockSpec((1, 1, TM), lambda b, t: (b, 0, t))]
    if return_directions:
        out_shape.append(jax.ShapeDtypeStruct((B, 3, Mp), jnp.float32))
        out_specs.append(pl.BlockSpec((1, 3, TM), lambda b, t: (b, 0, t)))

    # VMEM budget: ~32 B/lane per double-buffered streamed block + the (A, TM)
    # one-hot intermediates; clamp into [24, 40] MiB so v7x (64 MiB physical)
    # keeps headroom while v5e/v6e default scoped limits are lifted.
    n_buf = 2 + int(has_cell) + int(has_mask) + int(return_directions)
    vmem_est = TM * (64 * n_buf + 16 * A) + (2 << 20)
    vmem_limit = int(min(40 << 20, max(24 << 20, vmem_est)))

    kernel = functools.partial(_atom_distances_kernel, n_nbh=N,
                               has_cell=has_cell, has_mask=has_mask,
                               return_dirs=return_directions)

    outs = pl.pallas_call(
        kernel,
        out_shape=tuple(out_shape),
        grid_spec=pltpu.PrefetchScalarGridSpec(
            num_scalar_prefetch=0,
            grid=(B, n_tiles),
            in_specs=in_specs,
            out_specs=out_specs,
        ),
        compiler_params=pltpu.CompilerParams(
            dimension_semantics=("parallel", "parallel"),
            vmem_limit_bytes=vmem_limit),
    )(*inputs)

    dist_f = outs[0][:, 0, :M] if Mp != M else outs[0][:, 0, :]
    distances = dist_f.reshape(B, A, N)                               # pure reshape
    if return_directions:
        dvec_f = outs[1][:, :, :M] if Mp != M else outs[1]
        # Lane-dense kernel stores + one XLA transpose back to (B, A, N, 3);
        # writing (..., 3)-minor from the kernel would hit 3-lane strided DMAs.
        dist_vec = jnp.transpose(dvec_f.reshape(B, 3, A, N), (0, 2, 3, 1))
        return distances, dist_vec
    return distances


def _reference(positions, neighbors, cell, cell_offsets, neighbor_mask):
    """Pure-JAX reproduction of schnetpack's atom_distances (normalize_vecs=True)."""
    B = positions.shape[0]
    idx_m = jnp.arange(B)[:, None, None]
    pos_xyz = positions[idx_m, neighbors]                       # (B, A, N, 3)
    dist_vec = pos_xyz - positions[:, :, None, :]
    if cell is not None:
        offsets = jnp.einsum('band,bde->bane', cell_offsets, cell)
        dist_vec = dist_vec + offsets
    distances = jnp.sqrt(jnp.sum(dist_vec * dist_vec, axis=3))
    if neighbor_mask is not None:
        masked = jnp.where(neighbor_mask != 0, distances, 0.0)
        safe = jnp.where(neighbor_mask != 0, distances, 1.0)
    else:
        masked = distances
        safe = distances
    dvec = dist_vec / safe[..., None]
    return masked, dvec


if __name__ == "__main__":
    key = jax.random.PRNGKey(0)
    k1, k2, k3, k4, k5 = jax.random.split(key, 5)

    B, A, N = 2, 8, 8  # N_b, N_at, N_nbh
    positions = 2.0 * jax.random.normal(k1, (B, A, 3), jnp.float32)
    neighbors = jax.random.randint(k2, (B, A, N), 0, A).astype(jnp.int32)
    cell = jnp.tile(5.0 * jnp.eye(3, dtype=jnp.float32)[None], (B, 1, 1)) \
           + 0.1 * jax.random.normal(k3, (B, 3, 3), jnp.float32)
    cell_offsets = jax.random.randint(k4, (B, A, N, 3), -1, 2).astype(jnp.float32)
    neighbor_mask = (jax.random.uniform(k5, (B, A, N)) > 0.2).astype(jnp.float32)

    # Module default: AtomDistances(return_directions=False) -> distances only.
    dist = atom_distances_pallas(positions, neighbors, cell, cell_offsets,
                                 neighbor_mask, return_directions=False)
    # return_directions=True path.
    dist2, dvec = atom_distances_pallas(positions, neighbors, cell, cell_offsets,
                                        neighbor_mask, return_directions=True)

    # cell=None / neighbor_mask=None path (offsets + mask DMAs skipped entirely).
    # Use self-free neighbor lists so the reference has no 0/0 direction vectors.
    k6 = jax.random.fold_in(key, 6)
    neighbors_nc = ((jnp.arange(A)[None, :, None]
                     + jax.random.randint(k6, (B, A, N), 1, A)) % A).astype(jnp.int32)
    dist3, dvec3 = atom_distances_pallas(positions, neighbors_nc,
                                         return_directions=True)

    jax.block_until_ready((dist, dist2, dvec, dist3, dvec3))

    ref_dist, ref_dvec = _reference(positions, neighbors, cell, cell_offsets,
                                    neighbor_mask)
    ref_dist3, ref_dvec3 = _reference(positions, neighbors_nc, None, None, None)

    assert jnp.allclose(dist, ref_dist, atol=1e-5, rtol=1e-5)
    assert jnp.allclose(dist2, ref_dist, atol=1e-5, rtol=1e-5)
    assert jnp.allclose(dvec, ref_dvec, atol=1e-5, rtol=1e-5)
    assert jnp.allclose(dist3, ref_dist3, atol=1e-5, rtol=1e-5)
    assert jnp.allclose(dvec3, ref_dvec3, atol=1e-5, rtol=1e-5)

    print("KERNEL_OK")
</pallas_src>

<mosaic_0001>
module attributes {stable_mosaic.version = 11 : i64} {
  func.func @_atom_distances_kernel(%arg0: i32, %arg1: i32, %arg2: memref<1x3x8xf32, #tpu.memory_space<vmem>>, %arg3: memref<1x1x128xi32, #tpu.memory_space<vmem>>, %arg4: memref<18xf32, #tpu.memory_space<smem>>, %arg5: memref<1x3x128xi8, #tpu.memory_space<vmem>>, %arg6: memref<1x1x128xi8, #tpu.memory_space<vmem>>, %arg7: memref<1x1x128xf32, #tpu.memory_space<vmem>>) attributes {dimension_semantics = [#tpu.dimension_semantics<parallel>, #tpu.dimension_semantics<parallel>], iteration_bounds = array<i64: 2, 1>, scalar_prefetch = 0 : i64, scratch_operands = 0 : i64, tpu.core_type = #tpu.core_type<tc>, window_params = [{transform_indices = @transform_0, window_bounds = array<i64: 1, 3, 8>}, {transform_indices = @transform_1, window_bounds = array<i64: 1, 1, 128>}, {transform_indices = @transform_2, window_bounds = array<i64: 18>}, {transform_indices = @transform_3, window_bounds = array<i64: 1, 3, 128>}, {transform_indices = @transform_4, window_bounds = array<i64: 1, 1, 128>}, {transform_indices = @transform_5, window_bounds = array<i64: 1, 1, 128>}]} {
    %c0 = arith.constant 0 : index
    %c0_0 = arith.constant 0 : index
    %c0_1 = arith.constant 0 : index
    %0 = vector.load %arg2[%c0, %c0_0, %c0_1] : memref<1x3x8xf32, #tpu.memory_space<vmem>>, vector<1x3x8xf32>
    %1 = vector.shape_cast %0 : vector<1x3x8xf32> to vector<3x8xf32>
    %c0_2 = arith.constant 0 : index
    %c0_3 = arith.constant 0 : index
    %c0_4 = arith.constant 0 : index
    %2 = vector.load %arg3[%c0_2, %c0_3, %c0_4] : memref<1x1x128xi32, #tpu.memory_space<vmem>>, vector<1x1x128xi32>
    %3 = vector.shape_cast %2 : vector<1x1x128xi32> to vector<1x128xi32>
    %4 = tpu.iota {dimensions = array<i32: 0>} : vector<8x128xi32>
    %5 = tpu.iota {dimensions = array<i32: 1>} : vector<8x128xi32>
    %6 = vector.broadcast %3 : vector<1x128xi32> to vector<8x128xi32>
    %7 = arith.cmpi eq, %4, %6 : vector<8x128xi32>
    %8 = arith.extui %7 : vector<8x128xi1> to vector<8x128xi32>
    %9 = arith.sitofp %8 : vector<8x128xi32> to vector<8x128xf32>
    %c16_i32 = arith.constant 16 : i32
    %10 = arith.muli %arg1, %c16_i32 : i32
    %11 = vector.broadcast %10 : i32 to vector<8x128xi32>
    %12 = arith.subi %4, %11 : vector<8x128xi32>
    %c8_i32 = arith.constant 8 : i32
    %13 = vector.broadcast %c8_i32 : i32 to vector<8x128xi32>
    %14 = arith.muli %12, %13 : vector<8x128xi32>
    %15 = arith.cmpi sle, %14, %5 : vector<8x128xi32>
    %c8_i32_5 = arith.constant 8 : i32
    %16 = vector.broadcast %c8_i32_5 : i32 to vector<8x128xi32>
    %17 = arith.addi %14, %16 : vector<8x128xi32>
    %18 = arith.cmpi slt, %5, %17 : vector<8x128xi32>
    %19 = arith.andi %15, %18 : vector<8x128xi1>
    %20 = arith.extui %19 : vector<8x128xi1> to vector<8x128xi32>
    %21 = arith.sitofp %20 : vector<8x128xi32> to vector<8x128xf32>
    %22 = arith.subf %9, %21 : vector<8x128xf32>
    %cst = arith.constant dense<0.000000e+00> : vector<3x128xf32>
    %23 = tpu.matmul %1, %22, %cst {dimension_numbers = #tpu.dot_dimension_numbers<[1], [0], [0], [1], [0, 0, 1, 1], [], []>, precision = #tpu.contract_precision<fp32>} : vector<3x8xf32>, vector<8x128xf32>, vector<3x128xf32> -> vector<3x128xf32>
    %c0_6 = arith.constant 0 : index
    %c0_7 = arith.constant 0 : index
    %c0_8 = arith.constant 0 : index
    %24 = vector.load %arg5[%c0_6, %c0_7, %c0_8] : memref<1x3x128xi8, #tpu.memory_space<vmem>>, vector<1x3x128xi8>
    %25 = vector.shape_cast %24 : vector<1x3x128xi8> to vector<3x128xi8>
    %26 = arith.sitofp %25 : vector<3x128xi8> to vector<3x128xf32>
    %27 = vector.extract_strided_slice %26 {offsets = [0, 0], sizes = [1, 128], strides = [1, 1]} : vector<3x128xf32> to vector<1x128xf32>
    %28 = vector.extract_strided_slice %26 {offsets = [1, 0], sizes = [1, 128], strides = [1, 1]} : vector<3x128xf32> to vector<1x128xf32>
    %29 = vector.extract_strided_slice %26 {offsets = [2, 0], sizes = [1, 128], strides = [1, 1]} : vector<3x128xf32> to vector<1x128xf32>
    %c9_i32 = arith.constant 9 : i32
    %30 = arith.muli %c9_i32, %arg0 : i32
    %c0_i32 = arith.constant 0 : i32
    %31 = arith.addi %30, %c0_i32 : i32
    %32 = arith.index_cast %31 : i32 to index
    %33 = memref.load %arg4[%32] : memref<18xf32, #tpu.memory_space<smem>>
    %34 = vector.broadcast %33 : f32 to vector<1x128xf32>
    %35 = arith.mulf %34, %27 : vector<1x128xf32>
    %c9_i32_9 = arith.constant 9 : i32
    %36 = arith.muli %c9_i32_9, %arg0 : i32
    %c3_i32 = arith.constant 3 : i32
    %37 = arith.addi %36, %c3_i32 : i32
    %c0_i32_10 = arith.constant 0 : i32
    %38 = arith.addi %37, %c0_i32_10 : i32
    %39 = arith.index_cast %38 : i32 to index
    %40 = memref.load %arg4[%39] : memref<18xf32, #tpu.memory_space<smem>>
    %41 = vector.broadcast %40 : f32 to vector<1x128xf32>
    %42 = arith.mulf %41, %28 : vector<1x128xf32>
    %43 = arith.addf %35, %42 : vector<1x128xf32>
    %c9_i32_11 = arith.constant 9 : i32
    %44 = arith.muli %c9_i32_11, %arg0 : i32
    %c6_i32 = arith.constant 6 : i32
    %45 = arith.addi %44, %c6_i32 : i32
    %c0_i32_12 = arith.constant 0 : i32
    %46 = arith.addi %45, %c0_i32_12 : i32
    %47 = arith.index_cast %46 : i32 to index
    %48 = memref.load %arg4[%47] : memref<18xf32, #tpu.memory_space<smem>>
    %49 = vector.broadcast %48 : f32 to vector<1x128xf32>
    %50 = arith.mulf %49, %29 : vector<1x128xf32>
    %51 = arith.addf %43, %50 : vector<1x128xf32>
    %c9_i32_13 = arith.constant 9 : i32
    %52 = arith.muli %c9_i32_13, %arg0 : i32
    %c1_i32 = arith.constant 1 : i32
    %53 = arith.addi %52, %c1_i32 : i32
    %54 = arith.index_cast %53 : i32 to index
    %55 = memref.load %arg4[%54] : memref<18xf32, #tpu.memory_space<smem>>
    %56 = vector.broadcast %55 : f32 to vector<1x128xf32>
    %57 = arith.mulf %56, %27 : vector<1x128xf32>
    %c9_i32_14 = arith.constant 9 : i32
    %58 = arith.muli %c9_i32_14, %arg0 : i32
    %c3_i32_15 = arith.constant 3 : i32
    %59 = arith.addi %58, %c3_i32_15 : i32
    %c1_i32_16 = arith.constant 1 : i32
    %60 = arith.addi %59, %c1_i32_16 : i32
    %61 = arith.index_cast %60 : i32 to index
    %62 = memref.load %arg4[%61] : memref<18xf32, #tpu.memory_space<smem>>
    %63 = vector.broadcast %62 : f32 to vector<1x128xf32>
    %64 = arith.mulf %63, %28 : vector<1x128xf32>
    %65 = arith.addf %57, %64 : vector<1x128xf32>
    %c9_i32_17 = arith.constant 9 : i32
    %66 = arith.muli %c9_i32_17, %arg0 : i32
    %c6_i32_18 = arith.constant 6 : i32
    %67 = arith.addi %66, %c6_i32_18 : i32
    %c1_i32_19 = arith.constant 1 : i32
    %68 = arith.addi %67, %c1_i32_19 : i32
    %69 = arith.index_cast %68 : i32 to index
    %70 = memref.load %arg4[%69] : memref<18xf32, #tpu.memory_space<smem>>
    %71 = vector.broadcast %70 : f32 to vector<1x128xf32>
    %72 = arith.mulf %71, %29 : vector<1x128xf32>
    %73 = arith.addf %65, %72 : vector<1x128xf32>
    %c9_i32_20 = arith.constant 9 : i32
    %74 = arith.muli %c9_i32_20, %arg0 : i32
    %c2_i32 = arith.constant 2 : i32
    %75 = arith.addi %74, %c2_i32 : i32
    %76 = arith.index_cast %75 : i32 to index
    %77 = memref.load %arg4[%76] : memref<18xf32, #tpu.memory_space<smem>>
    %78 = vector.broadcast %77 : f32 to vector<1x128xf32>
    %79 = arith.mulf %78, %27 : vector<1x128xf32>
    %c9_i32_21 = arith.constant 9 : i32
    %80 = arith.muli %c9_i32_21, %arg0 : i32
    %c3_i32_22 = arith.constant 3 : i32
    %81 = arith.addi %80, %c3_i32_22 : i32
    %c2_i32_23 = arith.constant 2 : i32
    %82 = arith.addi %81, %c2_i32_23 : i32
    %83 = arith.index_cast %82 : i32 to index
    %84 = memref.load %arg4[%83] : memref<18xf32, #tpu.memory_space<smem>>
    %85 = vector.broadcast %84 : f32 to vector<1x128xf32>
    %86 = arith.mulf %85, %28 : vector<1x128xf32>
    %87 = arith.addf %79, %86 : vector<1x128xf32>
    %c9_i32_24 = arith.constant 9 : i32
    %88 = arith.muli %c9_i32_24, %arg0 : i32
    %c6_i32_25 = arith.constant 6 : i32
    %89 = arith.addi %88, %c6_i32_25 : i32
    %c2_i32_26 = arith.constant 2 : i32
    %90 = arith.addi %89, %c2_i32_26 : i32
    %91 = arith.index_cast %90 : i32 to index
    %92 = memref.load %arg4[%91] : memref<18xf32, #tpu.memory_space<smem>>
    %93 = vector.broadcast %92 : f32 to vector<1x128xf32>
    %94 = arith.mulf %93, %29 : vector<1x128xf32>
    %95 = arith.addf %87, %94 : vector<1x128xf32>
    %96 = tpu.concatenate %51, %73, %95 in 0 : vector<1x128xf32>, vector<1x128xf32>, vector<1x128xf32> -> vector<3x128xf32>
    %97 = arith.addf %23, %96 : vector<3x128xf32>
    %98 = arith.mulf %97, %97 : vector<3x128xf32>
    %cst_27 = arith.constant dense<0.000000e+00> : vector<128xf32>
    %99 = vector.multi_reduction <add>, %98, %cst_27 [0] : vector<3x128xf32> to vector<128xf32>
    %100 = vector.shape_cast %99 : vector<128xf32> to vector<1x128xf32>
    %101 = math.rsqrt %100 : vector<1x128xf32>
    %cst_28 = arith.constant 0.000000e+00 : f32
    %102 = vector.broadcast %cst_28 : f32 to vector<1x128xf32>
    %103 = arith.cmpf ogt, %100, %102 : vector<1x128xf32>
    %104 = arith.mulf %100, %101 : vector<1x128xf32>
    %cst_29 = arith.constant 0.000000e+00 : f32
    %105 = vector.broadcast %cst_29 : f32 to vector<1x128xf32>
    %106 = arith.select %103, %104, %105 : vector<1x128xi1>, vector<1x128xf32>
    %c0_30 = arith.constant 0 : index
    %c0_31 = arith.constant 0 : index
    %c0_32 = arith.constant 0 : index
    %107 = vector.load %arg6[%c0_30, %c0_31, %c0_32] : memref<1x1x128xi8, #tpu.memory_space<vmem>>, vector<1x1x128xi8>
    %108 = vector.shape_cast %107 : vector<1x1x128xi8> to vector<1x128xi8>
    %c0_i8 = arith.constant 0 : i8
    %109 = vector.broadcast %c0_i8 : i8 to vector<1x128xi8>
    %110 = arith.cmpi ne, %108, %109 : vector<1x128xi8>
    %cst_33 = arith.constant 0.000000e+00 : f32
    %111 = vector.broadcast %cst_33 : f32 to vector<1x128xf32>
    %112 = arith.select %110, %106, %111 : vector<1x128xi1>, vector<1x128xf32>
    %c0_34 = arith.constant 0 : index
    %c0_35 = arith.constant 0 : index
    %c0_36 = arith.constant 0 : index
    %113 = vector.load %arg7[%c0_34, %c0_35, %c0_36] : memref<1x1x128xf32, #tpu.memory_space<vmem>>, vector<1x1x128xf32>
    %114 = vector.shape_cast %113 : vector<1x1x128xf32> to vector<1x128xf32>
    %115 = vector.shape_cast %112 : vector<1x128xf32> to vector<1x1x128xf32>
    tpu.vector_store %arg7[%c0_34, %c0_35, %c0_36], %115 {strides = array<i32>} : memref<1x1x128xf32, #tpu.memory_space<vmem>>, vector<1x1x128xf32>,
    return
  }
  func.func @transform_0(%arg0: i32, %arg1: i32) -> (i32, i32, i32) {
    %c0_i32 = arith.constant 0 : i32
    %c0_i32_0 = arith.constant 0 : i32
    %c0_i32_1 = arith.constant 0 : i32
    return %arg0, %c0_i32, %c0_i32_0 : i32, i32, i32
  }
  func.func @transform_1(%arg0: i32, %arg1: i32) -> (i32, i32, i32) {
    %c0_i32 = arith.constant 0 : i32
    %c0_i32_0 = arith.constant 0 : i32
    return %arg0, %c0_i32, %arg1 : i32, i32, i32
  }
  func.func @transform_2(%arg0: i32, %arg1: i32) -> i32 {
    %c0_i32 = arith.constant 0 : i32
    %c0_i32_0 = arith.constant 0 : i32
    return %c0_i32 : i32
  }
  func.func @transform_3(%arg0: i32, %arg1: i32) -> (i32, i32, i32) {
    %c0_i32 = arith.constant 0 : i32
    %c0_i32_0 = arith.constant 0 : i32
    return %arg0, %c0_i32, %arg1 : i32, i32, i32
  }
  func.func @transform_4(%arg0: i32, %arg1: i32) -> (i32, i32, i32) {
    %c0_i32 = arith.constant 0 : i32
    %c0_i32_0 = arith.constant 0 : i32
    return %arg0, %c0_i32, %arg1 : i32, i32, i32
  }
  func.func @transform_5(%arg0: i32, %arg1: i32) -> (i32, i32, i32) {
    %c0_i32 = arith.constant 0 : i32
    %c0_i32_0 = arith.constant 0 : i32
    return %arg0, %c0_i32, %arg1 : i32, i32, i32
  }
}

</mosaic_0001>

<llo_original>
// kernel: tpu_custom_call.1
$region0: #{tpu_custom_call.1}
  #allocation0 [shape = 'u32[]', space=smem, size = 0x4, offset = 0x4, fixed_abs, tag = 'smem constant byte address 0x4 - core index']
  #allocation1 [shape = 'u32[144,128]{1,0:T(1,128)}', space=vmem, size = 0x12000, scoped, tag = 'internal scratch']
  %s0 = inlined_call_operand.vmem [shape: f32[2,3,8], index: 0, kind: input, shape index: {}]
  %s1 = inlined_call_operand.vmem [shape: s32[2,1,128], index: 1, kind: input, shape index: {}]
  %s2 = inlined_call_operand.vmem [shape: f32[18], index: 2, kind: input, shape index: {}]
  %s3 = inlined_call_operand.vmem [shape: s8[2,3,128], index: 3, kind: input, shape index: {}]
  %s4 = inlined_call_operand.vmem [shape: s8[2,1,128], index: 4, kind: input, shape index: {}]
  %s5 = inlined_call_operand.hbm [shape: f32[2,1,128], index: 5, kind: output, shape index: {}]
  %s6 = sld [smem:[#allocation0]]
  $region57: #{tpu_custom_call.1} parent=0
    _
  %s8 = ssub.s32 1, %s6
  %s9 = scalar_select 0, %s8, %s6
  $region1: #{tpu_custom_call.1} parent=0
    #allocation2 [shape = 'u8[512]{0}', space=smem, size = 0x200, scoped, tag = 'input window, operand 2, single buffered']
    #allocation3 [shape = 's32[2]{0}', space=sflag, size = 0x8, scoped, tag = 'scoped memory for tpu_custom_call.1']
    #allocation4 [shape = 's32[2]{0}', space=sflag, size = 0x8, scoped, tag = 'scoped memory for tpu_custom_call.1']
    #allocation5 [shape = 'u8[1024]{0}', space=vmem, size = 0x400, scoped, tag = 'output window, operand 0']
    %10 = vsyncpa [#allocation4], 0
    %11 = vsyncpa [#allocation3], 0
    %s12 = scalar_lea.sflag [#allocation3], 1
    %13 = vsyncpa %s12, 0
    loop: start=0, step=1, limit=4
    $region2: #{tpu_custom_call.1} parent=1 // loop_pre_header
      _
    $region3: #{tpu_custom_call.1} parent=1 // loop_header
      %s15 = sphi 0, %s19
      %p16 = scmp.ge.s32.totalorder %s15, 4
      %s22 = sphi 0, %s34
      %s23 = sphi 0, %s30
      %s24 = sphi 0, %s22
      %s25 = sphi 0, %s23
      %s26 = sphi 0, %s24
      %s27 = sphi 0, %s25
      %s37 = sphi 0, %s39
      %s40 = sphi 0, %s37
      %s41 = sphi 0, %s40
      %s57 = sphi 0, %s41
      %s65 = sphi 0, %s67
      %s68 = sphi 0, %s65
      %s69 = sphi 0, %s68
      %s85 = sphi 0, %s69
      %s89 = sphi 0, %s89
      %s91 = sphi 0, %s89
      %s92 = sphi 0, %s91
      %s106 = sphi 0, %s92
      %s114 = sphi 0, %s116
      %s117 = sphi 0, %s114
      %s118 = sphi 0, %s117
      %s134 = sphi 0, %s118
      %s142 = sphi 0, %s144
      %s145 = sphi 0, %s142
      %s146 = sphi 0, %s145
      %s162 = sphi 0, %s146
      %s170 = sphi 0, %s172
      %s173 = sphi 0, %s170
      %s174 = sphi 0, %s173
      %s190 = sphi 0, %s174
    $region4: #{tpu_custom_call.1} parent=1 // loop_header_branch
      %18 = sbr.rel (%p16) target = $region8
    $region5: #{tpu_custom_call.1} parent=1 // loop_body
      %s20 = ssub.s32 %s15, 1
      %s21 = ssub.s32 %s15, 2
      %s28 = sadd.s32 1, %s23
      %p29 = scmp.ge.s32.totalorder %s28, 1
      %s30 = scalar_select %p29, 0, %s28
      %s31 = sadd.s32 1, %s22
      %s32 = scalar_select %p29, %s31, %s22
      %p33 = scmp.ge.s32.totalorder %s32, 2
      %s34 = scalar_select %p33, 0, %s32
      %s35 = ssub.s32 %s22, %s34
      %p36 = scmp.eq.s32.totalorder %s35, 0
      %s38 = sadd.s32 %s37, 1
      %s39 = scalar_select %p36, %s37, %s38
      %p42 = pneg %p36
      %p43 = scmp.eq.s32.totalorder %s15, 1
      %p44 = por %p42, %p43
      %p45 = scmp.ne.s32.totalorder %s37, %s40
      %p46 = scmp.eq.s32.totalorder %s15, 0
      %p47 = por %p45, %p46
      %p48 = scmp.ne.s32.totalorder %s37, %s40
      %p49 = scmp.eq.s32.totalorder %s20, 1
      %p50 = por %p48, %p49
      %p51 = scmp.ne.s32.totalorder %s40, %s41
      %p52 = scmp.eq.s32.totalorder %s20, 0
      %p53 = por %p51, %p52
      %p54 = scmp.ne.s32.totalorder %s40, %s41
      %p55 = scmp.eq.s32.totalorder %s21, 1
      %p56 = por %p54, %p55
      %p58 = scmp.ne.s32.totalorder %s41, %s57
      %p59 = scmp.eq.s32.totalorder %s21, 0
      %p60 = por %p58, %p59
      %s61 = ssub.s32 %s22, %s34
      %s62 = ssub.s32 %s23, %s30
      %s63 = sor.u32 %s61, %s62
      %p64 = scmp.eq.s32.totalorder %s63, 0
      %s66 = sadd.s32 %s65, 1
      %s67 = scalar_select %p64, %s65, %s66
      %p70 = pneg %p64
      %p71 = scmp.eq.s32.totalorder %s15, 1
      %p72 = por %p70, %p71
      %p73 = scmp.ne.s32.totalorder %s65, %s68
      %p74 = scmp.eq.s32.totalorder %s15, 0
      %p75 = por %p73, %p74
      %p76 = scmp.ne.s32.totalorder %s65, %s68
      %p77 = scmp.eq.s32.totalorder %s20, 1
      %p78 = por %p76, %p77
      %p79 = scmp.ne.s32.totalorder %s68, %s69
      %p80 = scmp.eq.s32.totalorder %s20, 0
      %p81 = por %p79, %p80
      %p82 = scmp.ne.s32.totalorder %s68, %s69
      %p83 = scmp.eq.s32.totalorder %s21, 1
      %p84 = por %p82, %p83
      %p86 = scmp.ne.s32.totalorder %s69, %s85
      %p87 = scmp.eq.s32.totalorder %s21, 0
      %p88 = por %p86, %p87
      %s90 = sadd.s32 %s89, 1
      %p93 = scmp.eq.s32.totalorder %s15, 1
      %p94 = scmp.ne.s32.totalorder %s89, %s91
      %p95 = scmp.eq.s32.totalorder %s15, 0
      %p96 = por %p94, %p95
      %p97 = scmp.ne.s32.totalorder %s89, %s91
      %p98 = scmp.eq.s32.totalorder %s20, 1
      %p99 = por %p97, %p98
      %p100 = scmp.ne.s32.totalorder %s91, %s92
      %p101 = scmp.eq.s32.totalorder %s20, 0
      %p102 = por %p100, %p101
      %p103 = scmp.ne.s32.totalorder %s91, %s92
      %p104 = scmp.eq.s32.totalorder %s21, 1
      %p105 = por %p103, %p104
      %p107 = scmp.ne.s32.totalorder %s92, %s106
      %p108 = scmp.eq.s32.totalorder %s21, 0
      %p109 = por %p107, %p108
      %s110 = ssub.s32 %s22, %s34
      %s111 = ssub.s32 %s23, %s30
      %s112 = sor.u32 %s110, %s111
      %p113 = scmp.eq.s32.totalorder %s112, 0
      %s115 = sadd.s32 %s114, 1
      %s116 = scalar_select %p113, %s114, %s115
      %p119 = pneg %p113
      %p120 = scmp.eq.s32.totalorder %s15, 1
      %p121 = por %p119, %p120
      %p122 = scmp.ne.s32.totalorder %s114, %s117
      %p123 = scmp.eq.s32.totalorder %s15, 0
      %p124 = por %p122, %p123
      %p125 = scmp.ne.s32.totalorder %s114, %s117
      %p126 = scmp.eq.s32.totalorder %s20, 1
      %p127 = por %p125, %p126
      %p128 = scmp.ne.s32.totalorder %s117, %s118
      %p129 = scmp.eq.s32.totalorder %s20, 0
      %p130 = por %p128, %p129
      %p131 = scmp.ne.s32.totalorder %s117, %s118
      %p132 = scmp.eq.s32.totalorder %s21, 1
      %p133 = por %p131, %p132
      %p135 = scmp.ne.s32.totalorder %s118, %s134
      %p136 = scmp.eq.s32.totalorder %s21, 0
      %p137 = por %p135, %p136
      %s138 = ssub.s32 %s22, %s34
      %s139 = ssub.s32 %s23, %s30
      %s140 = sor.u32 %s138, %s139
      %p141 = scmp.eq.s32.totalorder %s140, 0
      %s143 = sadd.s32 %s142, 1
      %s144 = scalar_select %p141, %s142, %s143
      %p147 = pneg %p141
      %p148 = scmp.eq.s32.totalorder %s15, 1
      %p149 = por %p147, %p148
      %p150 = scmp.ne.s32.totalorder %s142, %s145
      %p151 = scmp.eq.s32.totalorder %s15, 0
      %p152 = por %p150, %p151
      %p153 = scmp.ne.s32.totalorder %s142, %s145
      %p154 = scmp.eq.s32.totalorder %s20, 1
      %p155 = por %p153, %p154
      %p156 = scmp.ne.s32.totalorder %s145, %s146
      %p157 = scmp.eq.s32.totalorder %s20, 0
      %p158 = por %p156, %p157
      %p159 = scmp.ne.s32.totalorder %s145, %s146
      %p160 = scmp.eq.s32.totalorder %s21, 1
      %p161 = por %p159, %p160
      %p163 = scmp.ne.s32.totalorder %s146, %s162
      %p164 = scmp.eq.s32.totalorder %s21, 0
      %p165 = por %p163, %p164
      %s166 = ssub.s32 %s22, %s34
      %s167 = ssub.s32 %s23, %s30
      %s168 = sor.u32 %s166, %s167
      %p169 = scmp.eq.s32.totalorder %s168, 0
      %s171 = sadd.s32 %s170, 1
      %s172 = scalar_select %p169, %s170, %s171
      %p175 = pneg %p169
      %p176 = scmp.eq.s32.totalorder %s15, 1
      %p177 = por %p175, %p176
      %p178 = scmp.ne.s32.totalorder %s170, %s173
      %p179 = scmp.eq.s32.totalorder %s15, 0
      %p180 = por %p178, %p179
      %p181 = scmp.ne.s32.totalorder %s170, %s173
      %p182 = scmp.eq.s32.totalorder %s20, 1
      %p183 = por %p181, %p182
      %p184 = scmp.ne.s32.totalorder %s173, %s174
      %p185 = scmp.eq.s32.totalorder %s20, 0
      %p186 = por %p184, %p185
      %p187 = scmp.ne.s32.totalorder %s173, %s174
      %p188 = scmp.eq.s32.totalorder %s21, 1
      %p189 = por %p187, %p188
      %p191 = scmp.ne.s32.totalorder %s174, %s190
      %p192 = scmp.eq.s32.totalorder %s21, 0
      %p193 = por %p191, %p192
      %p194 = scmp.le.s32.totalorder 1, %s15
      %p195 = scmp.lt.s32.totalorder %s15, 3
      %p196 = pnand %p194, %p195
      %p197 = pneg %p196
      // Predicated region
      $region9: #{tpu_custom_call.1} parent=5 // pred_check
        _
      $region10: #{tpu_custom_call.1} parent=5 // pred_check_branch
        %199 = sbr.rel (%p196) target = $region12
      $region11: #{tpu_custom_call.1} parent=5 // pred_region
        %s200 = ssub.s32 %s15, 1
        // Predicated region
        $region13: #{tpu_custom_call.1} parent=11 // pred_check
          %p201 = pneg %p102
        $region14: #{tpu_custom_call.1} parent=11 // pred_check_branch
          %203 = sbr.rel (%p201) target = $region16
        $region15: #{tpu_custom_call.1} parent=11 // pred_region
          %s205 = ssub.s32 16, 16
          %206 = vsyncadd [#allocation4], %s205
          %s208 = sshll.u32 %s2, 4
          %s209 = int_to_ptr.vmem [resolvable:$true] %s208
          %211 = dma.vmem_to_smem %s209, 16, [#allocation2], [#allocation4]
        $region16: #{tpu_custom_call.1} parent=11 // pred_fallthru
          _
      $region12: #{tpu_custom_call.1} parent=5 // pred_fallthru
        _
      %p212 = scmp.lt.s32.totalorder %s15, 2
      // Predicated region
      $region17: #{tpu_custom_call.1} parent=5 // pred_check
        %p213 = pneg %p212
      $region18: #{tpu_custom_call.1} parent=5 // pred_check_branch
        %215 = sbr.rel (%p213) target = $region20
      $region19: #{tpu_custom_call.1} parent=5 // pred_region
        // Predicated region
        $region21: #{tpu_custom_call.1} parent=19 // pred_check
          %p216 = pneg %p47
        $region22: #{tpu_custom_call.1} parent=19 // pred_check_branch
          %218 = sbr.rel (%p216) target = $region24
        $region23: #{tpu_custom_call.1} parent=19 // pred_region
          %p219 = scmp.lt.s32.totalorder %s22, 1
          %s220 = scalar_select %p219, %s22, 1
          %s221 = smul.addr %s220, 4
          %s222 = scalar_lea.vmem %s0, %s221
        $region24: #{tpu_custom_call.1} parent=19 // pred_fallthru
          _
        // Predicated region
        $region25: #{tpu_custom_call.1} parent=19 // pred_check
          %p223 = pneg %p75
        $region26: #{tpu_custom_call.1} parent=19 // pred_check_branch
          %225 = sbr.rel (%p223) target = $region28
        $region27: #{tpu_custom_call.1} parent=19 // pred_region
          %p226 = scmp.lt.s32.totalorder %s22, 1
          %s227 = scalar_select %p226, %s22, 1
          %p228 = scmp.lt.s32.totalorder %s23, 0
          %s229 = scalar_select %p228, %s23, 0
          %s230 = sadd.s32 %s229, %s227
          %s231 = scalar_lea.vmem %s1, %s230
        $region28: #{tpu_custom_call.1} parent=19 // pred_fallthru
          _
        // Predicated region
        $region29: #{tpu_custom_call.1} parent=19 // pred_check
          %p232 = pneg %p124
        $region30: #{tpu_custom_call.1} parent=19 // pred_check_branch
          %234 = sbr.rel (%p232) target = $region32
        $region31: #{tpu_custom_call.1} parent=19 // pred_region
          %p235 = scmp.lt.s32.totalorder %s22, 1
          %s236 = scalar_select %p235, %s22, 1
          %p237 = scmp.lt.s32.totalorder %s23, 0
          %s238 = scalar_select %p237, %s23, 0
          %s239 = sadd.s32 %s238, %s236
          %s240 = scalar_lea.vmem %s3, %s239
        $region32: #{tpu_custom_call.1} parent=19 // pred_fallthru
          _
        // Predicated region
        $region33: #{tpu_custom_call.1} parent=19 // pred_check
          %p241 = pneg %p152
        $region34: #{tpu_custom_call.1} parent=19 // pred_check_branch
          %243 = sbr.rel (%p241) target = $region36
        $region35: #{tpu_custom_call.1} parent=19 // pred_region
          %p244 = scmp.lt.s32.totalorder %s22, 1
          %s245 = scalar_select %p244, %s22, 1
          %p246 = scmp.lt.s32.totalorder %s23, 0
          %s247 = scalar_select %p246, %s23, 0
          %s248 = sadd.s32 %s247, %s245
          %s249 = scalar_lea.vmem %s4, %s248
        $region36: #{tpu_custom_call.1} parent=19 // pred_fallthru
          _
      $region20: #{tpu_custom_call.1} parent=5 // pred_fallthru
        _
      %p250 = scmp.le.s32.totalorder 1, %s15
      %p251 = scmp.lt.s32.totalorder %s15, 3
      %p252 = pnand %p250, %p251
      %p253 = pneg %p252
      // Predicated region
      $region37: #{tpu_custom_call.1} parent=5 // pred_check
        _
      $region38: #{tpu_custom_call.1} parent=5 // pred_check_branch
        %255 = sbr.rel (%p252) target = $region40
      $region39: #{tpu_custom_call.1} parent=5 // pred_region
        %s256 = ssub.s32 %s15, 1
        // Predicated region
        $region41: #{tpu_custom_call.1} parent=39 // pred_check
          %p257 = pneg %p102
        $region42: #{tpu_custom_call.1} parent=39 // pred_check_branch
          %259 = sbr.rel (%p257) target = $region44
        $region43: #{tpu_custom_call.1} parent=39 // pred_region
          %260 = dma.done [#allocation4], 16
        $region44: #{tpu_custom_call.1} parent=39 // pred_fallthru
          _
        %261 = sfence
        %p262 = scmp.lt.s32.totalorder %s24, 1
        %s263 = scalar_select %p262, %s24, 1
        %s264 = smul.addr %s263, 4
        %s265 = scalar_lea.vmem %s0, %s264
        %p266 = pneg %p53
        %p267 = pneg %p50
        %p268 = scmp.lt.s32.totalorder %s24, 1
        %s269 = scalar_select %p268, %s24, 1
        %p270 = scmp.lt.s32.totalorder %s25, 0
        %s271 = scalar_select %p270, %s25, 0
        %s272 = sadd.s32 %s271, %s269
        %s273 = scalar_lea.vmem %s1, %s272
        %p274 = pneg %p81
        %p275 = pneg %p78
        %p276 = pneg %p102
        %p277 = pneg %p99
        %p278 = scmp.lt.s32.totalorder %s24, 1
        %s279 = scalar_select %p278, %s24, 1
        %p280 = scmp.lt.s32.totalorder %s25, 0
        %s281 = scalar_select %p280, %s25, 0
        %s282 = sadd.s32 %s281, %s279
        %s283 = scalar_lea.vmem %s3, %s282
        %p284 = pneg %p130
        %p285 = pneg %p127
        %p286 = scmp.lt.s32.totalorder %s24, 1
        %s287 = scalar_select %p286, %s24, 1
        %p288 = scmp.lt.s32.totalorder %s25, 0
        %s289 = scalar_select %p288, %s25, 0
        %s290 = sadd.s32 %s289, %s287
        %s291 = scalar_lea.vmem %s4, %s290
        %p292 = pneg %p158
        %p293 = pneg %p155
        %p294 = pneg %p186
        %p295 = pneg %p183
        %s296 = sand.u32 %s173, 1
        %s297 = scalar_lea.sflag [#allocation3], %s296
        %s298 = sand.u32 %s173, 1
        %s299 = scalar_lea.vmem [#allocation5], %s298
        %p300 = scmp.lt.s32.totalorder %s24, 1
        %s301 = scalar_select %p300, %s24, 1
        %s302 = smul.addr %s301, 4
        %s303 = scalar_lea.vmem %s0, %s302
        %p304 = scmp.lt.s32.totalorder %s24, 1
        %s305 = scalar_select %p304, %s24, 1
        %p306 = scmp.lt.s32.totalorder %s25, 0
        %s307 = scalar_select %p306, %s25, 0
        %s308 = sadd.s32 %s307, %s305
        %s309 = scalar_lea.vmem %s1, %s308
        %p310 = scmp.lt.s32.totalorder %s24, 1
        %s311 = scalar_select %p310, %s24, 1
        %p312 = scmp.lt.s32.totalorder %s25, 0
        %s313 = scalar_select %p312, %s25, 0
        %s314 = sadd.s32 %s313, %s311
        %s315 = scalar_lea.vmem %s3, %s314
        %p316 = scmp.lt.s32.totalorder %s24, 1
        %s317 = scalar_select %p316, %s24, 1
        %p318 = scmp.lt.s32.totalorder %s25, 0
        %s319 = scalar_select %p318, %s25, 0
        %s320 = sadd.s32 %s319, %s317
        %s321 = scalar_lea.vmem %s4, %s320
        %v324 = vld [vmem:[%s303] sm:$0x7]
        %v325 = vld [vmem:[%s309] sm:$0x1]
        %v326 = vlaneseq
        %v327 = vshrl.u32 %v326, 7
        %v328 = vlaneseq
        %v329 = vand.u32 %v328, 127
        %v330 = vlaneseq
        %v331 = vshrl.u32 %v330, 7
        %v332 = vsub.s32 0, %v331
        %v333 = vrot.slane %v325, %v332
        %vm334 = vcmp.eq.s32.totalorder %v327, %v333
        %v335 = vsel %vm334, 1, 0
        %v336 = vcvt.s32.f32 %v335
        %s337 = smul.u32 %s25, 16
        %v338 = vstv %s337
        %v339 = vsub.s32 %v327, %v338
        %v340 = vmul.u32 %v339, 8
        %vm341 = vcmp.le.s32.totalorder %v340, %v329
        %v342 = vadd.s32 %v340, 8
        %vm343 = vcmp.lt.s32.totalorder %v329, %v342
        %vm344 = vmand %vm341, %vm343
        %v345 = vsel %vm344, 1, 0
        %v346 = vcvt.s32.f32 %v345
        %v347 = vsub.f32 %v336, %v346
        %v348 = vld [vmem:[%s315] sm:$0x1]
        %v349 = vunpack.c.0.s8 %v348
        %v350 = vcvt.s32.f32 %v349
        %s351 = smul.u32 %s24, 9
        %s352 = sld [smem:[#allocation2 + %s351]]
        %v353 = vstv %s352
        %v354 = vmul.f32 %v353, %v350
        %s355 = sadd.s32 %s351, 3
        %s356 = sld [smem:[#allocation2 + %s355]]
        %v357 = vstv %s356
        %v358 = vmul.f32 %v357, %v350
        %v360 = vrot.slane %v358, 5
        %v361 = vrot.slane %v360, 4
        %v363 = vadd.f32 %v354, %v361
        %s364 = sadd.s32 %s351, 6
        %s365 = sld [smem:[#allocation2 + %s364]]
        %v366 = vstv %s365
        %v367 = vmul.f32 %v366, %v350
        %v369 = vrot.slane %v367, 6
        %v370 = vrot.slane %v369, 4
        %v372 = vadd.f32 %v363, %v370
        %s373 = sadd.s32 %s351, 1
        %s374 = sld [smem:[#allocation2 + %s373]]
        %v375 = vstv %s374
        %v376 = vmul.f32 %v375, %v350
        %s377 = sadd.s32 %s351, 4
        %s378 = sld [smem:[#allocation2 + %s377]]
        %v379 = vstv %s378
        %v380 = vmul.f32 %v379, %v350
        %v382 = vrot.slane %v380, 5
        %v383 = vrot.slane %v382, 4
        %v385 = vadd.f32 %v376, %v383
        %s386 = sadd.s32 %s351, 7
        %s387 = sld [smem:[#allocation2 + %s386]]
        %v388 = vstv %s387
        %v389 = vmul.f32 %v388, %v350
        %v391 = vrot.slane %v389, 6
        %v392 = vrot.slane %v391, 4
        %v394 = vadd.f32 %v385, %v392
        %s395 = sadd.s32 %s351, 2
        %s396 = sld [smem:[#allocation2 + %s395]]
        %v397 = vstv %s396
        %v398 = vmul.f32 %v397, %v350
        %s399 = sadd.s32 %s351, 5
        %s400 = sld [smem:[#allocation2 + %s399]]
        %v401 = vstv %s400
        %v402 = vmul.f32 %v401, %v350
        %v404 = vrot.slane %v402, 5
        %v405 = vrot.slane %v404, 4
        %v407 = vadd.f32 %v398, %v405
        %s408 = sadd.s32 %s351, 8
        %s409 = sld [smem:[#allocation2 + %s408]]
        %v410 = vstv %s409
        %v411 = vmul.f32 %v410, %v350
        %v413 = vrot.slane %v411, 6
        %v414 = vrot.slane %v413, 4
        %v416 = vadd.f32 %v407, %v414
        %v418 = vlaneseq
        %v419 = vshrl.u32 %v418, 7
        %v420 = vsub.s32 0, %v419
        %v421 = vrot.slane %v394, %v420
        %v424 = vlaneseq
        %v425 = vshrl.u32 %v424, 7
        %v426 = vsub.s32 0, %v425
        %v427 = vrot.slane %v416, %v426
        %vm429 = vcmask 1040384
        %v430 = vsel %vm429, %v372, %v421
        %vm431 = vcmask 1041408
        %v432 = vsel %vm431, %v430, %v427
        %vm433 = vcmask 64512
        %v435 = vsel %vm433, %v324, 0
        %437 = vmatprep.subr.mxu0 0.0
        %438 = vmatpush1.msra.mxu0 0.0
        %439 = vmatprep.subr.mxu0 0.0
        %440 = vmatpush1.msra.mxu0 0.0
        %441 = vmatprep.subr.mxu0 0.0
        %442 = vmatpush1.msra.mxu0 0.0
        %443 = vmatprep.subr.mxu0 0.0
        %444 = vmatpush1.msra.mxu0 0.0
        %445 = vmatprep.subr.mxu0 0.0
        %446 = vmatpush1.msra.mxu0 0.0
        %447 = vmatprep.subr.mxu0 0.0
        %448 = vmatpush1.msra.mxu0 0.0
        %449 = vmatprep.subr.mxu0 0.0
        %450 = vmatpush1.msra.mxu0 0.0
        %451 = vmatprep.subr.mxu0 0.0
        %452 = vmatpush1.msra.mxu0 0.0
        %453 = vmatprep.subr.mxu0 0.0
        %454 = vmatpush1.msra.mxu0 0.0
        %455 = vmatprep.subr.mxu0 0.0
        %456 = vmatpush1.msra.mxu0 0.0
        %457 = vmatprep.subr.mxu0 0.0
        %458 = vmatpush1.msra.mxu0 0.0
        %459 = vmatprep.subr.mxu0 0.0
        %460 = vmatpush1.msra.mxu0 0.0
        %461 = vmatprep.subr.mxu0 0.0
        %462 = vmatpush1.msra.mxu0 0.0
        %463 = vmatprep.subr.mxu0 0.0
        %464 = vmatpush1.msra.mxu0 0.0
        %465 = vmatprep.subr.mxu0 0.0
        %466 = vmatpush1.msra.mxu0 0.0
        %467 = vmatprep.subr.mxu0 0.0
        %v468 = vand.u32 %v347, 4294901760
        %469 = vmatpush1.msra.mxu0 %v468
        %470 = vmatprep.subr.mxu0 0.0
        %471 = vmatpush2.msra.mxu0 0.0
        %472 = vmatprep.subr.mxu0 0.0
        %473 = vmatpush2.msra.mxu0 0.0
        %474 = vmatprep.subr.mxu0 0.0
        %475 = vmatpush2.msra.mxu0 0.0
        %476 = vmatprep.subr.mxu0 0.0
        %477 = vmatpush2.msra.mxu0 0.0
        %478 = vmatprep.subr.mxu0 0.0
        %479 = vmatpush2.msra.mxu0 0.0
        %480 = vmatprep.subr.mxu0 0.0
        %481 = vmatpush2.msra.mxu0 0.0
        %482 = vmatprep.subr.mxu0 0.0
        %483 = vmatpush2.msra.mxu0 0.0
        %484 = vmatprep.subr.mxu0 0.0
        %485 = vmatpush2.msra.mxu0 0.0
        %486 = vmatprep.subr.mxu0 0.0
        %487 = vmatpush2.msra.mxu0 0.0
        %488 = vmatprep.subr.mxu0 0.0
        %489 = vmatpush2.msra.mxu0 0.0
        %490 = vmatprep.subr.mxu0 0.0
        %491 = vmatpush2.msra.mxu0 0.0
        %492 = vmatprep.subr.mxu0 0.0
        %493 = vmatpush2.msra.mxu0 0.0
        %494 = vmatprep.subr.mxu0 0.0
        %495 = vmatpush2.msra.mxu0 0.0
        %496 = vmatprep.subr.mxu0 0.0
        %497 = vmatpush2.msra.mxu0 0.0
        %498 = vmatprep.subr.mxu0 0.0
        %499 = vmatpush2.msra.mxu0 0.0
        %500 = vmatprep.subr.mxu0 0.0
        %501 = vmatpush2.msra.mxu0 0.0
        %502 = vmatprep.mubr.f32.mxu0 0.0
        %v503 = vand.u32 %v435, 4294901760
        %v504 = vsub.f32 %v435, %v503
        %v505 = vand.u32 %v504, 4294901760
        %v506 = vsub.f32 %v504, %v505
        %v507 = vand.u32 %v506, 4294901760
        %508 = vmatmul.mubr.f32.gmra.mxu0 %v507
        %v509 = vpop.f32.mrf.mxu0
        %v510 = vadd.f32 %v432, %v509
        %v511 = vpop.f32.mrf.mxu0
        %512 = vdwg.mxu0
        %513 = vmatprep.subr.mxu0 0.0
        %514 = vmatpush1.msra.mxu0 0.0
        %515 = vmatprep.subr.mxu0 0.0
        %516 = vmatpush1.msra.mxu0 0.0
        %517 = vmatprep.subr.mxu0 0.0
        %518 = vmatpush1.msra.mxu0 0.0
        %519 = vmatprep.subr.mxu0 0.0
        %520 = vmatpush1.msra.mxu0 0.0
        %521 = vmatprep.subr.mxu0 0.0
        %522 = vmatpush1.msra.mxu0 0.0
        %523 = vmatprep.subr.mxu0 0.0
        %524 = vmatpush1.msra.mxu0 0.0
        %525 = vmatprep.subr.mxu0 0.0
        %526 = vmatpush1.msra.mxu0 0.0
        %527 = vmatprep.subr.mxu0 0.0
        %528 = vmatpush1.msra.mxu0 0.0
        %529 = vmatprep.subr.mxu0 0.0
        %530 = vmatpush1.msra.mxu0 0.0
        %531 = vmatprep.subr.mxu0 0.0
        %532 = vmatpush1.msra.mxu0 0.0
        %533 = vmatprep.subr.mxu0 0.0
        %534 = vmatpush1.msra.mxu0 0.0
        %535 = vmatprep.subr.mxu0 0.0
        %536 = vmatpush1.msra.mxu0 0.0
        %537 = vmatprep.subr.mxu0 0.0
        %538 = vmatpush1.msra.mxu0 0.0
        %539 = vmatprep.subr.mxu0 0.0
        %540 = vmatpush1.msra.mxu0 0.0
        %541 = vmatprep.subr.mxu0 0.0
        %542 = vmatpush1.msra.mxu0 0.0
        %543 = vmatprep.subr.mxu0 0.0
        %v544 = vand.u32 %v347, 4294901760
        %v545 = vsub.f32 %v347, %v544
        %v546 = vand.u32 %v545, 4294901760
        %v547 = vsub.f32 %v545, %v546
        %v548 = vand.u32 %v547, 4294901760
        %549 = vmatpush1.msra.mxu0 %v548
        %550 = vmatprep.subr.mxu0 0.0
        %551 = vmatpush2.msra.mxu0 0.0
        %552 = vmatprep.subr.mxu0 0.0
        %553 = vmatpush2.msra.mxu0 0.0
        %554 = vmatprep.subr.mxu0 0.0
        %555 = vmatpush2.msra.mxu0 0.0
        %556 = vmatprep.subr.mxu0 0.0
        %557 = vmatpush2.msra.mxu0 0.0
        %558 = vmatprep.subr.mxu0 0.0
        %559 = vmatpush2.msra.mxu0 0.0
        %560 = vmatprep.subr.mxu0 0.0
        %561 = vmatpush2.msra.mxu0 0.0
        %562 = vmatprep.subr.mxu0 0.0
        %563 = vmatpush2.msra.mxu0 0.0
        %564 = vmatprep.subr.mxu0 0.0
        %565 = vmatpush2.msra.mxu0 0.0
        %566 = vmatprep.subr.mxu0 0.0
        %567 = vmatpush2.msra.mxu0 0.0
        %568 = vmatprep.subr.mxu0 0.0
        %569 = vmatpush2.msra.mxu0 0.0
        %570 = vmatprep.subr.mxu0 0.0
        %571 = vmatpush2.msra.mxu0 0.0
        %572 = vmatprep.subr.mxu0 0.0
        %573 = vmatpush2.msra.mxu0 0.0
        %574 = vmatprep.subr.mxu0 0.0
        %575 = vmatpush2.msra.mxu0 0.0
        %576 = vmatprep.subr.mxu0 0.0
        %577 = vmatpush2.msra.mxu0 0.0
        %578 = vmatprep.subr.mxu0 0.0
        %579 = vmatpush2.msra.mxu0 0.0
        %580 = vmatprep.subr.mxu0 0.0
        %581 = vmatpush2.msra.mxu0 0.0
        %582 = vmatprep.mubr.f32.mxu0 0.0
        %v583 = vand.u32 %v435, 4294901760
        %584 = vmatmul.mubr.f32.gmra.mxu0 %v583
        %v585 = vpop.f32.mrf.mxu0
        %v586 = vadd.f32 %v510, %v585
        %v587 = vpop.f32.mrf.mxu0
        %588 = vdwg.mxu0
        %589 = vmatprep.subr.mxu0 0.0
        %590 = vmatpush1.msra.mxu0 0.0
        %591 = vmatprep.subr.mxu0 0.0
        %592 = vmatpush1.msra.mxu0 0.0
        %593 = vmatprep.subr.mxu0 0.0
        %594 = vmatpush1.msra.mxu0 0.0
        %595 = vmatprep.subr.mxu0 0.0
        %596 = vmatpush1.msra.mxu0 0.0
        %597 = vmatprep.subr.mxu0 0.0
        %598 = vmatpush1.msra.mxu0 0.0
        %599 = vmatprep.subr.mxu0 0.0
        %600 = vmatpush1.msra.mxu0 0.0
        %601 = vmatprep.subr.mxu0 0.0
        %602 = vmatpush1.msra.mxu0 0.0
        %603 = vmatprep.subr.mxu0 0.0
        %604 = vmatpush1.msra.mxu0 0.0
        %605 = vmatprep.subr.mxu0 0.0
        %606 = vmatpush1.msra.mxu0 0.0
        %607 = vmatprep.subr.mxu0 0.0
        %608 = vmatpush1.msra.mxu0 0.0
        %609 = vmatprep.subr.mxu0 0.0
        %610 = vmatpush1.msra.mxu0 0.0
        %611 = vmatprep.subr.mxu0 0.0
        %612 = vmatpush1.msra.mxu0 0.0
        %613 = vmatprep.subr.mxu0 0.0
        %614 = vmatpush1.msra.mxu0 0.0
        %615 = vmatprep.subr.mxu0 0.0
        %616 = vmatpush1.msra.mxu0 0.0
        %617 = vmatprep.subr.mxu0 0.0
        %618 = vmatpush1.msra.mxu0 0.0
        %619 = vmatprep.subr.mxu0 0.0
        %v620 = vand.u32 %v347, 4294901760
        %v621 = vsub.f32 %v347, %v620
        %622 = vmatpush1.msra.mxu0 %v621
        %623 = vmatprep.subr.mxu0 0.0
        %624 = vmatpush2.msra.mxu0 0.0
        %625 = vmatprep.subr.mxu0 0.0
        %626 = vmatpush2.msra.mxu0 0.0
        %627 = vmatprep.subr.mxu0 0.0
        %628 = vmatpush2.msra.mxu0 0.0
        %629 = vmatprep.subr.mxu0 0.0
        %630 = vmatpush2.msra.mxu0 0.0
        %631 = vmatprep.subr.mxu0 0.0
        %632 = vmatpush2.msra.mxu0 0.0
        %633 = vmatprep.subr.mxu0 0.0
        %634 = vmatpush2.msra.mxu0 0.0
        %635 = vmatprep.subr.mxu0 0.0
        %636 = vmatpush2.msra.mxu0 0.0
        %637 = vmatprep.subr.mxu0 0.0
        %638 = vmatpush2.msra.mxu0 0.0
        %639 = vmatprep.subr.mxu0 0.0
        %640 = vmatpush2.msra.mxu0 0.0
        %641 = vmatprep.subr.mxu0 0.0
        %642 = vmatpush2.msra.mxu0 0.0
        %643 = vmatprep.subr.mxu0 0.0
        %644 = vmatpush2.msra.mxu0 0.0
        %645 = vmatprep.subr.mxu0 0.0
        %646 = vmatpush2.msra.mxu0 0.0
        %647 = vmatprep.subr.mxu0 0.0
        %648 = vmatpush2.msra.mxu0 0.0
        %649 = vmatprep.subr.mxu0 0.0
        %650 = vmatpush2.msra.mxu0 0.0
        %651 = vmatprep.subr.mxu0 0.0
        %652 = vmatpush2.msra.mxu0 0.0
        %653 = vmatprep.subr.mxu0 0.0
        %654 = vmatpush2.msra.mxu0 0.0
        %655 = vmatprep.mubr.f32.mxu0 0.0
        %v656 = vand.u32 %v435, 4294901760
        %v657 = vsub.f32 %v435, %v656
        %658 = vmatmul.mubr.f32.gmra.mxu0 %v657
        %v659 = vpop.f32.mrf.mxu0
        %v660 = vadd.f32 %v586, %v659
        %v661 = vpop.f32.mrf.mxu0
        %662 = vdwg.mxu0
        %663 = vmatprep.subr.mxu0 0.0
        %664 = vmatpush1.msra.mxu0 0.0
        %665 = vmatprep.subr.mxu0 0.0
        %666 = vmatpush1.msra.mxu0 0.0
        %667 = vmatprep.subr.mxu0 0.0
        %668 = vmatpush1.msra.mxu0 0.0
        %669 = vmatprep.subr.mxu0 0.0
        %670 = vmatpush1.msra.mxu0 0.0
        %671 = vmatprep.subr.mxu0 0.0
        %672 = vmatpush1.msra.mxu0 0.0
        %673 = vmatprep.subr.mxu0 0.0
        %674 = vmatpush1.msra.mxu0 0.0
        %675 = vmatprep.subr.mxu0 0.0
        %676 = vmatpush1.msra.mxu0 0.0
        %677 = vmatprep.subr.mxu0 0.0
        %678 = vmatpush1.msra.mxu0 0.0
        %679 = vmatprep.subr.mxu0 0.0
        %680 = vmatpush1.msra.mxu0 0.0
        %681 = vmatprep.subr.mxu0 0.0
        %682 = vmatpush1.msra.mxu0 0.0
        %683 = vmatprep.subr.mxu0 0.0
        %684 = vmatpush1.msra.mxu0 0.0
        %685 = vmatprep.subr.mxu0 0.0
        %686 = vmatpush1.msra.mxu0 0.0
        %687 = vmatprep.subr.mxu0 0.0
        %688 = vmatpush1.msra.mxu0 0.0
        %689 = vmatprep.subr.mxu0 0.0
        %690 = vmatpush1.msra.mxu0 0.0
        %691 = vmatprep.subr.mxu0 0.0
        %692 = vmatpush1.msra.mxu0 0.0
        %693 = vmatprep.subr.mxu0 0.0
        %v694 = vand.u32 %v347, 4294901760
        %695 = vmatpush1.msra.mxu0 %v694
        %696 = vmatprep.subr.mxu0 0.0
        %697 = vmatpush2.msra.mxu0 0.0
        %698 = vmatprep.subr.mxu0 0.0
        %699 = vmatpush2.msra.mxu0 0.0
        %700 = vmatprep.subr.mxu0 0.0
        %701 = vmatpush2.msra.mxu0 0.0
        %702 = vmatprep.subr.mxu0 0.0
        %703 = vmatpush2.msra.mxu0 0.0
        %704 = vmatprep.subr.mxu0 0.0
        %705 = vmatpush2.msra.mxu0 0.0
        %706 = vmatprep.subr.mxu0 0.0
        %707 = vmatpush2.msra.mxu0 0.0
        %708 = vmatprep.subr.mxu0 0.0
        %709 = vmatpush2.msra.mxu0 0.0
        %710 = vmatprep.subr.mxu0 0.0
        %711 = vmatpush2.msra.mxu0 0.0
        %712 = vmatprep.subr.mxu0 0.0
        %713 = vmatpush2.msra.mxu0 0.0
        %714 = vmatprep.subr.mxu0 0.0
        %715 = vmatpush2.msra.mxu0 0.0
        %716 = vmatprep.subr.mxu0 0.0
        %717 = vmatpush2.msra.mxu0 0.0
        %718 = vmatprep.subr.mxu0 0.0
        %719 = vmatpush2.msra.mxu0 0.0
        %720 = vmatprep.subr.mxu0 0.0
        %721 = vmatpush2.msra.mxu0 0.0
        %722 = vmatprep.subr.mxu0 0.0
        %723 = vmatpush2.msra.mxu0 0.0
        %724 = vmatprep.subr.mxu0 0.0
        %725 = vmatpush2.msra.mxu0 0.0
        %726 = vmatprep.subr.mxu0 0.0
        %727 = vmatpush2.msra.mxu0 0.0
        %728 = vmatprep.mubr.f32.mxu0 0.0
        %v729 = vand.u32 %v435, 4294901760
        %v730 = vsub.f32 %v435, %v729
        %v731 = vand.u32 %v730, 4294901760
        %732 = vmatmul.mubr.f32.gmra.mxu0 %v731
        %v733 = vpop.f32.mrf.mxu0
        %v734 = vadd.f32 %v660, %v733
        %v735 = vpop.f32.mrf.mxu0
        %736 = vdwg.mxu0
        %737 = vmatprep.subr.mxu0 0.0
        %738 = vmatpush1.msra.mxu0 0.0
        %739 = vmatprep.subr.mxu0 0.0
        %740 = vmatpush1.msra.mxu0 0.0
        %741 = vmatprep.subr.mxu0 0.0
        %742 = vmatpush1.msra.mxu0 0.0
        %743 = vmatprep.subr.mxu0 0.0
        %744 = vmatpush1.msra.mxu0 0.0
        %745 = vmatprep.subr.mxu0 0.0
        %746 = vmatpush1.msra.mxu0 0.0
        %747 = vmatprep.subr.mxu0 0.0
        %748 = vmatpush1.msra.mxu0 0.0
        %749 = vmatprep.subr.mxu0 0.0
        %750 = vmatpush1.msra.mxu0 0.0
        %751 = vmatprep.subr.mxu0 0.0
        %752 = vmatpush1.msra.mxu0 0.0
        %753 = vmatprep.subr.mxu0 0.0
        %754 = vmatpush1.msra.mxu0 0.0
        %755 = vmatprep.subr.mxu0 0.0
        %756 = vmatpush1.msra.mxu0 0.0
        %757 = vmatprep.subr.mxu0 0.0
        %758 = vmatpush1.msra.mxu0 0.0
        %759 = vmatprep.subr.mxu0 0.0
        %760 = vmatpush1.msra.mxu0 0.0
        %761 = vmatprep.subr.mxu0 0.0
        %762 = vmatpush1.msra.mxu0 0.0
        %763 = vmatprep.subr.mxu0 0.0
        %764 = vmatpush1.msra.mxu0 0.0
        %765 = vmatprep.subr.mxu0 0.0
        %766 = vmatpush1.msra.mxu0 0.0
        %767 = vmatprep.subr.mxu0 0.0
        %v768 = vand.u32 %v347, 4294901760
        %v769 = vsub.f32 %v347, %v768
        %v770 = vand.u32 %v769, 4294901760
        %771 = vmatpush1.msra.mxu0 %v770
        %772 = vmatprep.subr.mxu0 0.0
        %773 = vmatpush2.msra.mxu0 0.0
        %774 = vmatprep.subr.mxu0 0.0
        %775 = vmatpush2.msra.mxu0 0.0
        %776 = vmatprep.subr.mxu0 0.0
        %777 = vmatpush2.msra.mxu0 0.0
        %778 = vmatprep.subr.mxu0 0.0
        %779 = vmatpush2.msra.mxu0 0.0
        %780 = vmatprep.subr.mxu0 0.0
        %781 = vmatpush2.msra.mxu0 0.0
        %782 = vmatprep.subr.mxu0 0.0
        %783 = vmatpush2.msra.mxu0 0.0
        %784 = vmatprep.subr.mxu0 0.0
        %785 = vmatpush2.msra.mxu0 0.0
        %786 = vmatprep.subr.mxu0 0.0
        %787 = vmatpush2.msra.mxu0 0.0
        %788 = vmatprep.subr.mxu0 0.0
        %789 = vmatpush2.msra.mxu0 0.0
        %790 = vmatprep.subr.mxu0 0.0
        %791 = vmatpush2.msra.mxu0 0.0
        %792 = vmatprep.subr.mxu0 0.0
        %793 = vmatpush2.msra.mxu0 0.0
        %794 = vmatprep.subr.mxu0 0.0
        %795 = vmatpush2.msra.mxu0 0.0
        %796 = vmatprep.subr.mxu0 0.0
        %797 = vmatpush2.msra.mxu0 0.0
        %798 = vmatprep.subr.mxu0 0.0
        %799 = vmatpush2.msra.mxu0 0.0
        %800 = vmatprep.subr.mxu0 0.0
        %801 = vmatpush2.msra.mxu0 0.0
        %802 = vmatprep.subr.mxu0 0.0
        %803 = vmatpush2.msra.mxu0 0.0
        %804 = vmatprep.mubr.f32.mxu0 0.0
        %v805 = vand.u32 %v435, 4294901760
        %806 = vmatmul.mubr.f32.gmra.mxu0 %v805
        %v807 = vpop.f32.mrf.mxu0
        %v808 = vadd.f32 %v734, %v807
        %v809 = vpop.f32.mrf.mxu0
        %810 = vdwg.mxu0
        %811 = vmatprep.subr.mxu0 0.0
        %812 = vmatpush1.msra.mxu0 0.0
        %813 = vmatprep.subr.mxu0 0.0
        %814 = vmatpush1.msra.mxu0 0.0
        %815 = vmatprep.subr.mxu0 0.0
        %816 = vmatpush1.msra.mxu0 0.0
        %817 = vmatprep.subr.mxu0 0.0
        %818 = vmatpush1.msra.mxu0 0.0
        %819 = vmatprep.subr.mxu0 0.0
        %820 = vmatpush1.msra.mxu0 0.0
        %821 = vmatprep.subr.mxu0 0.0
        %822 = vmatpush1.msra.mxu0 0.0
        %823 = vmatprep.subr.mxu0 0.0
        %824 = vmatpush1.msra.mxu0 0.0
        %825 = vmatprep.subr.mxu0 0.0
        %826 = vmatpush1.msra.mxu0 0.0
        %827 = vmatprep.subr.mxu0 0.0
        %828 = vmatpush1.msra.mxu0 0.0
        %829 = vmatprep.subr.mxu0 0.0
        %830 = vmatpush1.msra.mxu0 0.0
        %831 = vmatprep.subr.mxu0 0.0
        %832 = vmatpush1.msra.mxu0 0.0
        %833 = vmatprep.subr.mxu0 0.0
        %834 = vmatpush1.msra.mxu0 0.0
        %835 = vmatprep.subr.mxu0 0.0
        %836 = vmatpush1.msra.mxu0 0.0
        %837 = vmatprep.subr.mxu0 0.0
        %838 = vmatpush1.msra.mxu0 0.0
        %839 = vmatprep.subr.mxu0 0.0
        %840 = vmatpush1.msra.mxu0 0.0
        %841 = vmatprep.subr.mxu0 0.0
        %v842 = vand.u32 %v347, 4294901760
        %843 = vmatpush1.msra.mxu0 %v842
        %844 = vmatprep.subr.mxu0 0.0
        %845 = vmatpush2.msra.mxu0 0.0
        %846 = vmatprep.subr.mxu0 0.0
        %847 = vmatpush2.msra.mxu0 0.0
        %848 = vmatprep.subr.mxu0 0.0
        %849 = vmatpush2.msra.mxu0 0.0
        %850 = vmatprep.subr.mxu0 0.0
        %851 = vmatpush2.msra.mxu0 0.0
        %852 = vmatprep.subr.mxu0 0.0
        %853 = vmatpush2.msra.mxu0 0.0
        %854 = vmatprep.subr.mxu0 0.0
        %855 = vmatpush2.msra.mxu0 0.0
        %856 = vmatprep.subr.mxu0 0.0
        %857 = vmatpush2.msra.mxu0 0.0
        %858 = vmatprep.subr.mxu0 0.0
        %859 = vmatpush2.msra.mxu0 0.0
        %860 = vmatprep.subr.mxu0 0.0
        %861 = vmatpush2.msra.mxu0 0.0
        %862 = vmatprep.subr.mxu0 0.0
        %863 = vmatpush2.msra.mxu0 0.0
        %864 = vmatprep.subr.mxu0 0.0
        %865 = vmatpush2.msra.mxu0 0.0
        %866 = vmatprep.subr.mxu0 0.0
        %867 = vmatpush2.msra.mxu0 0.0
        %868 = vmatprep.subr.mxu0 0.0
        %869 = vmatpush2.msra.mxu0 0.0
        %870 = vmatprep.subr.mxu0 0.0
        %871 = vmatpush2.msra.mxu0 0.0
        %872 = vmatprep.subr.mxu0 0.0
        %873 = vmatpush2.msra.mxu0 0.0
        %874 = vmatprep.subr.mxu0 0.0
        %875 = vmatpush2.msra.mxu0 0.0
        %876 = vmatprep.mubr.f32.mxu0 0.0
        %v877 = vand.u32 %v435, 4294901760
        %878 = vmatmul.mubr.f32.gmra.mxu0 %v877
        %v879 = vpop.f32.mrf.mxu0
        %v880 = vadd.f32 %v808, %v879
        %v881 = vpop.f32.mrf.mxu0
        %882 = vdwg.mxu0
        %v883 = vmul.f32 %v880, %v880
        %vm884 = vcmask 1042432
        %v885 = vsel %vm884, %v883, 0.0
        %v886 = vrot.slane %v885, 4
        %v887 = vadd.f32 %v885, %v886
        %v888 = vrot.slane %v887, 2
        %v889 = vadd.f32 %v887, %v888
        %v890 = vrot.slane %v889, 1
        %v891 = vadd.f32 %v889, %v890
        %v892 = vrsqrt.pop %v891
        %vm893 = vcmp.gt.f32.partialorder %v891, 0.0
        %v894 = vmul.f32 %v891, %v892
        %v895 = vsel %vm893, %v894, 0.0
        %v896 = vld [vmem:[%s321] sm:$0x1]
        %vm897 = vnez %v896
        %v898 = vsel %vm897, 16843009, 0
        %v899 = vunpack.c.0.s8 %v898
        %vm900 = vcmp.ne.s32.totalorder %v899, 0
        %v901 = vsel %vm900, 1, 0
        %v902 = vlaneseq
        %v903 = vshrl.u32 %v902, 7
        %v904 = vsub.s32 0, %v903
        %v905 = vrot.slane %v901, %v904
        %vm906 = vcmp.ne.s32.totalorder %v905, 0
        %v907 = vsel %vm906, %v895, 0.0
        %908 = vst [vmem:[%s299] sm:$0x1] %v907
        %s909 = sand.u32 %s173, 1
        %s910 = scalar_lea.sflag [#allocation3], %s909
        %s911 = sand.u32 %s173, 1
        %s912 = scalar_lea.vmem [#allocation5], %s911
        // Predicated region
        $region45: #{tpu_custom_call.1} parent=39 // pred_check
          %p913 = pneg %p183
        $region46: #{tpu_custom_call.1} parent=39 // pred_check_branch
          %915 = sbr.rel (%p913) target = $region48
        $region47: #{tpu_custom_call.1} parent=39 // pred_region
          %s917 = ssub.s32 16, 16
          %918 = vsyncadd %s910, %s917
          %s919 = sadd.s32 %s25, %s24
          %s920 = smul.addr %s919, 16
          %s921 = scalar_lea.hbm %s5, %s920
          %s923 = sshll.u32 %s912, 4
          %s924 = int_to_ptr.vmem [resolvable:$true] %s923
          %926 = dma.vmem_to_hbm [thread:$0]  %s924, 16, %s921, %s910
        $region48: #{tpu_custom_call.1} parent=39 // pred_fallthru
          _
      $region40: #{tpu_custom_call.1} parent=5 // pred_fallthru
        _
      %p927 = scmp.le.s32.totalorder 2, %s15
      // Predicated region
      $region49: #{tpu_custom_call.1} parent=5 // pred_check
        %p928 = pneg %p927
      $region50: #{tpu_custom_call.1} parent=5 // pred_check_branch
        %930 = sbr.rel (%p928) target = $region52
      $region51: #{tpu_custom_call.1} parent=5 // pred_region
        %s931 = ssub.s32 %s15, 2
        // Predicated region
        $region53: #{tpu_custom_call.1} parent=51 // pred_check
          %p932 = pneg %p189
        $region54: #{tpu_custom_call.1} parent=51 // pred_check_branch
          %934 = sbr.rel (%p932) target = $region56
        $region55: #{tpu_custom_call.1} parent=51 // pred_region
          %s935 = sand.u32 %s174, 1
          %s936 = scalar_lea.sflag [#allocation3], %s935
          %s937 = sand.u32 %s174, 1
          %s938 = scalar_lea.vmem [#allocation5], %s937
          %939 = dma.done %s936, 16
        $region56: #{tpu_custom_call.1} parent=51 // pred_fallthru
          _
      $region52: #{tpu_custom_call.1} parent=5 // pred_fallthru
        _
    $region6: #{tpu_custom_call.1} parent=1 // loop_footer
      %s19 = sadd.s32 1, %s15
    $region7: #{tpu_custom_call.1} parent=1 // loop_footer_branch
      %14 = sbr.rel target = $region3
    $region8: #{tpu_custom_call.1} parent=1 // loop_exit
      _
    %940 = vsyncpa [#allocation3], 1
    %s941 = scalar_lea.sflag [#allocation3], 1
    %942 = vsyncpa %s941, 1
    %943 = vsyncpa [#allocation4], 1
    %s944 = scalar_lea.sflag [#allocation4], 1
    %945 = vsyncpa %s944, 1

</llo_original>
